<compile_context>
chip_gen: v6e
topology: v6e:2x2x1
jax: 0.10.0
libtpu: 0.0.40
codegen_flags: <defaults>
</compile_context>

<pallas_src>
import functools

import jax
import jax.numpy as jnp
from jax.experimental import pallas as pl
from jax.experimental.pallas import tpu as pltpu


def _round_up(x, m):
    return ((x + m - 1) // m) * m


def _vmem_capacity_bytes():
    """Per-TensorCore VMEM capacity; conservative 64 MiB (v7x) fallback."""
    try:
        cap = int(pltpu.get_tpu_info().vmem_capacity_bytes)
        if cap > 0:
            return cap
    except Exception:
        pass
    return 64 << 20


def _bln_head_kernel(br_ref, m_ref, w1_br_ref, w1_m_ref, b1_ref, w2t_ref, b2_ref,
                     out_ref, acc1_ref, acc2_ref, *,
                     ts, s1, s2, ns1, ns2, ns_total):
    """Grid = (batch tiles [parallel], sequence tiles [reduction])."""
    s = pl.program_id(1)

    # Init the f32 sequence-sum accumulators at the first sequence step.
    @pl.when(s == 0)
    def _():
        acc1_ref[...] = jnp.zeros_like(acc1_ref)
        acc2_ref[...] = jnp.zeros_like(acc2_ref)

    def _accumulate(acc_ref, x_ref, ns_x, rem):
        """Add this step's sequence-sum of x into acc (f32 accumulation).

        Pallas leaves out-of-bounds block rows undefined, so the ragged last
        tile is masked via a static slice of the valid `rem` rows.  The steady
        state path sums the whole tile with the dtype convert fused into the
        reduction (no full-tile f32 temporary).
        """
        def _full():
            acc_ref[...] += jnp.sum(x_ref[...], axis=1, dtype=jnp.float32)

        def _tail():
            acc_ref[...] += jnp.sum(x_ref[:, :rem, :], axis=1, dtype=jnp.float32)

        if rem == ts:                           # every tile of this input is full
            if ns_x == ns_total:
                _full()                         # longest input: runs every step
            else:
                pl.when(s < ns_x)(_full)        # shorter input: skip once finished
        else:                                   # ragged last tile -> mask its tail
            if ns_x > 1:
                pl.when(s < ns_x - 1)(_full)
            pl.when(s == ns_x - 1)(_tail)

    _accumulate(acc1_ref, br_ref, ns1, s1 - (ns1 - 1) * ts)
    _accumulate(acc2_ref, m_ref, ns2, s2 - (ns2 - 1) * ts)

    # Finalize: mean (multiply once by 1/S), MLP head, lane-dense store.
    @pl.when(s == ns_total - 1)
    def _():
        v1 = acc1_ref[...] * (1.0 / s1)                                 # [tb, D1]
        v2 = acc2_ref[...] * (1.0 / s2)                                 # [tb, D2]
        # Linear(D1+D2 -> H) on cat(v1, v2), split into two MXU matmuls.
        h = (jnp.dot(v1, w1_br_ref[...], preferred_element_type=jnp.float32)
             + jnp.dot(v2, w1_m_ref[...], preferred_element_type=jnp.float32)
             + b1_ref[...])                                             # [tb, H]
        h = jnp.maximum(h, 0.0)
        # Linear(H -> 1) as a VPU multiply + cross-lane reduce (w2 passed as [1,H]).
        logits = jnp.sum(h * w2t_ref[...], axis=-1, keepdims=True) + b2_ref[0]
        out_ref[...] = jnp.broadcast_to(logits[:, :, None], out_ref.shape)


def bln_t5_concat_head(br_hidden, m_hidden, w1, b1, w2, b2, *, tb=None, ts=None):
    """Pooling + concat + MLP head, fully inside one tiled Pallas kernel.

    br_hidden: [B, S1, D1], m_hidden: [B, S2, D2] (streamed in their native dtype)
    w1: [D1+D2, H], b1: [H], w2: [H, 1], b2: [1]
    returns logits [B, 1] f32 (the PyTorch forward returns logits).
    """
    B, S1, D1 = br_hidden.shape
    Bm, S2, D2 = m_hidden.shape
    assert Bm == B
    H = w1.shape[1]
    assert w1.shape == (D1 + D2, H)
    assert w2.shape == (H, 1)

    br_item = jnp.dtype(br_hidden.dtype).itemsize
    m_item = jnp.dtype(m_hidden.dtype).itemsize

    # --- tile selection (generation-aware VMEM budget) -----------------------
    vmem_cap = _vmem_capacity_bytes()
    hard_cap = max(vmem_cap - (16 << 20), 16 << 20)     # leave compiler headroom

    if tb is None:
        tb = 8
        if B >= 2 and pl.cdiv(B, tb) < 2:
            tb = pl.cdiv(B, 2)       # >= 2 batch tiles so both v7x TCs get work
    tb = max(1, min(int(tb), B))

    s_needed = _round_up(max(S1, S2), 16)
    if ts is None:
        ts = 512                      # big sequence tile: fewer steps, bigger DMAs
    ts = min(_round_up(int(ts), 16), s_needed)

    weight_bytes = ((D1 + D2) * H + 2 * H) * 4          # single-buffered residents

    def _budget(tb_, ts_):
        inputs = 2 * tb_ * ts_ * (D1 * br_item + D2 * m_item)   # 2 bufs per stream
        scratch = tb_ * (D1 + D2) * 4
        outputs = 2 * tb_ * 128 * 4
        return inputs + weight_bytes + scratch + outputs

    def _fits(tb_, ts_):
        return int(1.2 * _budget(tb_, ts_)) + (6 << 20) <= hard_cap

    while not _fits(tb, ts) and ts > 64:                # shrink sequence tile first
        ts = max(64, _round_up(ts // 2, 16))
    while not _fits(tb, ts) and tb > 1:                 # then the batch tile
        tb = max(1, (tb + 1) // 2)

    vmem_limit = min(hard_cap, max(32 << 20, int(1.2 * _budget(tb, ts)) + (6 << 20)))

    # --- grid (decoupled sequence reductions) --------------------------------
    nb = pl.cdiv(B, tb)
    ns1 = pl.cdiv(S1, ts)
    ns2 = pl.cdiv(S2, ts)
    ns = max(ns1, ns2)

    def _seq_idx_map(ns_x):
        # Clamp the shorter input's block index: its last block stays resident
        # in VMEM (no re-DMA) while the longer input keeps streaming.
        if ns_x == ns:
            return lambda b, s: (b, s, 0)
        last = ns_x - 1
        return lambda b, s: (b, jnp.minimum(s, last), 0)

    # Small head parameters in f32 (negligible bytes, matches torch numerics).
    w1_br = w1[:D1, :].astype(jnp.float32)
    w1_m = w1[D1:, :].astype(jnp.float32)
    b1_2d = jnp.asarray(b1, jnp.float32).reshape(1, H)
    w2t = jnp.asarray(w2, jnp.float32).reshape(1, H)    # (H,1) -> (1,H) == transpose
    b2_sc = jnp.asarray(b2, jnp.float32).reshape(1)     # SMEM scalar

    kernel = functools.partial(
        _bln_head_kernel, ts=ts, s1=S1, s2=S2, ns1=ns1, ns2=ns2, ns_total=ns)

    resident = dict(pipeline_mode=pl.Buffered(1))       # constant index -> 1 buffer
    in_specs = [
        pl.BlockSpec((tb, ts, D1), _seq_idx_map(ns1)),              # br hidden tile
        pl.BlockSpec((tb, ts, D2), _seq_idx_map(ns2)),              # method hidden tile
        pl.BlockSpec((D1, H), lambda b, s: (0, 0), **resident),     # W1 (br half)
        pl.BlockSpec((D2, H), lambda b, s: (0, 0), **resident),     # W1 (method half)
        pl.BlockSpec((1, H), lambda b, s: (0, 0), **resident),      # b1
        pl.BlockSpec((1, H), lambda b, s: (0, 0), **resident),      # w2^T
        pl.BlockSpec(memory_space=pltpu.MemorySpace.SMEM),          # b2 scalar
    ]
    # Lane-dense output block, resident across the sequence (reduction) axis.
    out_spec = pl.BlockSpec((tb, 1, 128), lambda b, s: (b, 0, 0))

    bytes_accessed = (B * S1 * D1 * br_item + B * S2 * D2 * m_item
                      + weight_bytes + 4 + B * 128 * 4)
    flops = (B * (S1 * D1 + S2 * D2)        # sequence-sum adds
             + 2 * B * (D1 + D2) * H        # Linear(D1+D2 -> H)
             + 2 * B * H)                   # Linear(H -> 1)

    out = pl.pallas_call(
        kernel,
        out_shape=jax.ShapeDtypeStruct((B, 1, 128), jnp.float32),
        grid_spec=pltpu.PrefetchScalarGridSpec(
            num_scalar_prefetch=0,
            grid=(nb, ns),
            in_specs=in_specs,
            out_specs=out_spec,
            scratch_shapes=[pltpu.VMEM((tb, D1), jnp.float32),
                            pltpu.VMEM((tb, D2), jnp.float32)],
        ),
        compiler_params=pltpu.CompilerParams(
            dimension_semantics=("parallel", "arbitrary"),
            vmem_limit_bytes=int(vmem_limit),
        ),
        cost_estimate=pl.CostEstimate(flops=int(flops), transcendentals=0,
                                      bytes_accessed=int(bytes_accessed)),
    )(br_hidden, m_hidden, w1_br, w1_m, b1_2d, w2t, b2_sc)

    return out[:, 0, :1]


def fake_t5_encoder(input_ids, attention_mask, embed_table):
    # TODO(synk): the pretrained (frozen) T5 / CodeT5 encoders are external
    # checkpointed models with no clean Pallas equivalent here; we emulate
    # last_hidden_state with a deterministic embedding lookup, zeroing padded
    # positions via attention_mask.
    h = embed_table[input_ids]                                    # [B, S, D]
    return h * attention_mask[..., None].astype(h.dtype)


if __name__ == "__main__":
    # Small synthetic shapes consistent with the module's forward.
    B = 2               # batch
    S_BR, S_M = 24, 16  # seq lengths for bug report / method tokens (unequal on purpose)
    D1, D2 = 32, 32     # t5 d_model / code_t5 hidden_size (synthetic)
    H = 32              # hidden_dim of the MLP
    VOCAB = 64

    key = jax.random.PRNGKey(0)
    (k_ids1, k_ids2, k_emb1, k_emb2, k_w1, k_b1, k_w2, k_b2) = jax.random.split(key, 8)

    br_input_ids = jax.random.randint(k_ids1, (B, S_BR), 0, VOCAB)
    method_input_ids = jax.random.randint(k_ids2, (B, S_M), 0, VOCAB)
    br_attention_mask = jnp.ones((B, S_BR), dtype=jnp.int32).at[:, -2:].set(0)
    method_attention_mask = jnp.ones((B, S_M), dtype=jnp.int32).at[:, -1:].set(0)

    # Deterministic synthetic parameters.
    emb_text = jax.random.normal(k_emb1, (VOCAB, D1), jnp.float32) * 0.1
    emb_code = jax.random.normal(k_emb2, (VOCAB, D2), jnp.float32) * 0.1
    w1 = jax.random.normal(k_w1, (D1 + D2, H), jnp.float32) * 0.05
    b1 = jax.random.normal(k_b1, (H,), jnp.float32) * 0.05
    w2 = jax.random.normal(k_w2, (H, 1), jnp.float32) * 0.05
    b2 = jax.random.normal(k_b2, (1,), jnp.float32) * 0.05

    # "Encoder" outputs (glue, plain JAX).
    br_hidden = fake_t5_encoder(br_input_ids, br_attention_mask, emb_text)
    m_hidden = fake_t5_encoder(method_input_ids, method_attention_mask, emb_code)

    # Pure-JAX f32 reference of the exact forward semantics (mean over the full
    # sequence, concat, MLP head; the module returns logits).
    v1 = br_hidden.mean(axis=1)
    v2 = m_hidden.mean(axis=1)
    v = jnp.concatenate([v1, v2], axis=1)
    ref = jnp.maximum(v @ w1 + b1, 0.0) @ w2 + b2

    # 1) Default tiling (single sequence step at these small shapes; nb=2 so the
    #    parallel batch axis exercises megacore sharding on v7x).
    logits = bln_t5_concat_head(br_hidden, m_hidden, w1, b1, w2, b2)
    logits = jax.block_until_ready(logits)
    assert logits.shape == (B, 1)
    assert jnp.allclose(logits, ref, atol=1e-4, rtol=1e-4), (logits, ref)

    # 2) Explicit small tiles: exercises the decoupled multi-step sequence
    #    reduction (ns1=2, ns2=1 with a clamped/resident block for the shorter
    #    input) and the in-kernel ragged-tail masking.
    logits_tiled = bln_t5_concat_head(br_hidden, m_hidden, w1, b1, w2, b2, tb=2, ts=16)
    logits_tiled = jax.block_until_ready(logits_tiled)
    assert logits_tiled.shape == (B, 1)
    assert jnp.allclose(logits_tiled, ref, atol=1e-4, rtol=1e-4), (logits_tiled, ref)

    print("KERNEL_OK")
</pallas_src>

<mosaic_0001>
module attributes {stable_mosaic.version = 11 : i64} {
  func.func @_bln_head_kernel(%arg0: i32, %arg1: i32, %arg2: memref<1x32x32xf32, #tpu.memory_space<vmem>>, %arg3: memref<1x32x32xf32, #tpu.memory_space<vmem>>, %arg4: memref<32x32xf32, #tpu.memory_space<vmem>>, %arg5: memref<32x32xf32, #tpu.memory_space<vmem>>, %arg6: memref<1x32xf32, #tpu.memory_space<vmem>>, %arg7: memref<1x32xf32, #tpu.memory_space<vmem>>, %arg8: memref<1xf32, #tpu.memory_space<smem>>, %arg9: memref<1x1x128xf32, #tpu.memory_space<vmem>>, %arg10: memref<1x32xf32, #tpu.memory_space<vmem>>, %arg11: memref<1x32xf32, #tpu.memory_space<vmem>>) attributes {dimension_semantics = [#tpu.dimension_semantics<parallel>, #tpu.dimension_semantics<arbitrary>], iteration_bounds = array<i64: 2, 1>, scalar_prefetch = 0 : i64, scratch_operands = 2 : i64, tpu.core_type = #tpu.core_type<tc>, window_params = [{transform_indices = @transform_0, window_bounds = array<i64: 1, 32, 32>}, {transform_indices = @transform_1, window_bounds = array<i64: 1, 32, 32>}, {pipeline_mode = #tpu.pipeline_mode<synchronous>, transform_indices = @transform_2, window_bounds = array<i64: 32, 32>}, {pipeline_mode = #tpu.pipeline_mode<synchronous>, transform_indices = @transform_3, window_bounds = array<i64: 32, 32>}, {pipeline_mode = #tpu.pipeline_mode<synchronous>, transform_indices = @transform_4, window_bounds = array<i64: 1, 32>}, {pipeline_mode = #tpu.pipeline_mode<synchronous>, transform_indices = @transform_5, window_bounds = array<i64: 1, 32>}, {transform_indices = @transform_6, window_bounds = array<i64: 1>}, {transform_indices = @transform_7, window_bounds = array<i64: 1, 1, 128>}]} {
    %c0_i32 = arith.constant 0 : i32
    %0 = arith.cmpi eq, %arg1, %c0_i32 : i32
    %1 = arith.extui %0 : i1 to i32
    %c0_i32_0 = arith.constant 0 : i32
    %2 = arith.cmpi ne, %1, %c0_i32_0 : i32
    scf.if %2 {
      %cst = arith.constant 0.000000e+00 : f32
      %12 = vector.broadcast %cst : f32 to vector<1x32xf32>
      %c0 = arith.constant 0 : index
      %c0_7 = arith.constant 0 : index
      %13 = vector.load %arg10[%c0, %c0_7] : memref<1x32xf32, #tpu.memory_space<vmem>>, vector<1x32xf32>
      tpu.vector_store %arg10[%c0, %c0_7], %12 {strides = array<i32>} : memref<1x32xf32, #tpu.memory_space<vmem>>, vector<1x32xf32>,
      %cst_8 = arith.constant 0.000000e+00 : f32
      %14 = vector.broadcast %cst_8 : f32 to vector<1x32xf32>
      %c0_9 = arith.constant 0 : index
      %c0_10 = arith.constant 0 : index
      %15 = vector.load %arg11[%c0_9, %c0_10] : memref<1x32xf32, #tpu.memory_space<vmem>>, vector<1x32xf32>
      tpu.vector_store %arg11[%c0_9, %c0_10], %14 {strides = array<i32>} : memref<1x32xf32, #tpu.memory_space<vmem>>, vector<1x32xf32>,
    } else {
    }
    %c0_i32_1 = arith.constant 0 : i32
    %3 = arith.cmpi eq, %arg1, %c0_i32_1 : i32
    %4 = arith.extui %3 : i1 to i32
    %c0_i32_2 = arith.constant 0 : i32
    %5 = arith.cmpi ne, %4, %c0_i32_2 : i32
    scf.if %5 {
      %c0 = arith.constant 0 : index
      %c0_7 = arith.constant 0 : index
      %12 = vector.load %arg10[%c0, %c0_7] : memref<1x32xf32, #tpu.memory_space<vmem>>, vector<1x32xf32>
      %c0_8 = arith.constant 0 : index
      %c0_9 = arith.constant 0 : index
      %c0_10 = arith.constant 0 : index
      %13 = vector.load %arg2[%c0_8, %c0_9, %c0_10] : memref<1x32x32xf32, #tpu.memory_space<vmem>>, vector<1x24x32xf32>
      %cst = arith.constant dense<0.000000e+00> : vector<1x32xf32>
      %14 = vector.multi_reduction <add>, %13, %cst [1] : vector<1x24x32xf32> to vector<1x32xf32>
      %15 = arith.addf %12, %14 : vector<1x32xf32>
      %c0_11 = arith.constant 0 : index
      %c0_12 = arith.constant 0 : index
      %16 = vector.load %arg10[%c0_11, %c0_12] : memref<1x32xf32, #tpu.memory_space<vmem>>, vector<1x32xf32>
      tpu.vector_store %arg10[%c0_11, %c0_12], %15 {strides = array<i32>} : memref<1x32xf32, #tpu.memory_space<vmem>>, vector<1x32xf32>,
    } else {
    }
    %c0_i32_3 = arith.constant 0 : i32
    %6 = arith.cmpi eq, %arg1, %c0_i32_3 : i32
    %7 = arith.extui %6 : i1 to i32
    %c0_i32_4 = arith.constant 0 : i32
    %8 = arith.cmpi ne, %7, %c0_i32_4 : i32
    scf.if %8 {
      %c0 = arith.constant 0 : index
      %c0_7 = arith.constant 0 : index
      %12 = vector.load %arg11[%c0, %c0_7] : memref<1x32xf32, #tpu.memory_space<vmem>>, vector<1x32xf32>
      %c0_8 = arith.constant 0 : index
      %c0_9 = arith.constant 0 : index
      %c0_10 = arith.constant 0 : index
      %13 = vector.load %arg3[%c0_8, %c0_9, %c0_10] : memref<1x32x32xf32, #tpu.memory_space<vmem>>, vector<1x16x32xf32>
      %cst = arith.constant dense<0.000000e+00> : vector<1x32xf32>
      %14 = vector.multi_reduction <add>, %13, %cst [1] : vector<1x16x32xf32> to vector<1x32xf32>
      %15 = arith.addf %12, %14 : vector<1x32xf32>
      %c0_11 = arith.constant 0 : index
      %c0_12 = arith.constant 0 : index
      %16 = vector.load %arg11[%c0_11, %c0_12] : memref<1x32xf32, #tpu.memory_space<vmem>>, vector<1x32xf32>
      tpu.vector_store %arg11[%c0_11, %c0_12], %15 {strides = array<i32>} : memref<1x32xf32, #tpu.memory_space<vmem>>, vector<1x32xf32>,
    } else {
    }
    %c0_i32_5 = arith.constant 0 : i32
    %9 = arith.cmpi eq, %arg1, %c0_i32_5 : i32
    %10 = arith.extui %9 : i1 to i32
    %c0_i32_6 = arith.constant 0 : i32
    %11 = arith.cmpi ne, %10, %c0_i32_6 : i32
    scf.if %11 {
      %c0 = arith.constant 0 : index
      %c0_7 = arith.constant 0 : index
      %12 = vector.load %arg10[%c0, %c0_7] : memref<1x32xf32, #tpu.memory_space<vmem>>, vector<1x32xf32>
      %cst = arith.constant 0.0416666679 : f32
      %13 = vector.broadcast %cst : f32 to vector<1x32xf32>
      %14 = arith.mulf %12, %13 : vector<1x32xf32>
      %c0_8 = arith.constant 0 : index
      %c0_9 = arith.constant 0 : index
      %15 = vector.load %arg11[%c0_8, %c0_9] : memref<1x32xf32, #tpu.memory_space<vmem>>, vector<1x32xf32>
      %cst_10 = arith.constant 6.250000e-02 : f32
      %16 = vector.broadcast %cst_10 : f32 to vector<1x32xf32>
      %17 = arith.mulf %15, %16 : vector<1x32xf32>
      %c0_11 = arith.constant 0 : index
      %c0_12 = arith.constant 0 : index
      %18 = vector.load %arg4[%c0_11, %c0_12] : memref<32x32xf32, #tpu.memory_space<vmem>>, vector<32x32xf32>
      %cst_13 = arith.constant dense<0.000000e+00> : vector<1x32xf32>
      %19 = tpu.matmul %14, %18, %cst_13 {dimension_numbers = #tpu.dot_dimension_numbers<[1], [0], [0], [1], [0, 0, 1, 1], [], []>} : vector<1x32xf32>, vector<32x32xf32>, vector<1x32xf32> -> vector<1x32xf32>
      %c0_14 = arith.constant 0 : index
      %c0_15 = arith.constant 0 : index
      %20 = vector.load %arg5[%c0_14, %c0_15] : memref<32x32xf32, #tpu.memory_space<vmem>>, vector<32x32xf32>
      %cst_16 = arith.constant dense<0.000000e+00> : vector<1x32xf32>
      %21 = tpu.matmul %17, %20, %cst_16 {dimension_numbers = #tpu.dot_dimension_numbers<[1], [0], [0], [1], [0, 0, 1, 1], [], []>} : vector<1x32xf32>, vector<32x32xf32>, vector<1x32xf32> -> vector<1x32xf32>
      %22 = arith.addf %19, %21 : vector<1x32xf32>
      %c0_17 = arith.constant 0 : index
      %c0_18 = arith.constant 0 : index
      %23 = vector.load %arg6[%c0_17, %c0_18] : memref<1x32xf32, #tpu.memory_space<vmem>>, vector<1x32xf32>
      %24 = arith.addf %22, %23 : vector<1x32xf32>
      %cst_19 = arith.constant 0.000000e+00 : f32
      %25 = vector.broadcast %cst_19 : f32 to vector<1x32xf32>
      %26 = arith.maximumf %24, %25 : vector<1x32xf32>
      %c0_20 = arith.constant 0 : index
      %c0_21 = arith.constant 0 : index
      %27 = vector.load %arg7[%c0_20, %c0_21] : memref<1x32xf32, #tpu.memory_space<vmem>>, vector<1x32xf32>
      %28 = arith.mulf %26, %27 : vector<1x32xf32>
      %cst_22 = arith.constant dense<0.000000e+00> : vector<1xf32>
      %29 = vector.multi_reduction <add>, %28, %cst_22 [1] : vector<1x32xf32> to vector<1xf32>
      %30 = vector.shape_cast %29 : vector<1xf32> to vector<1x1xf32>
      %c0_23 = arith.constant 0 : index
      %31 = memref.load %arg8[%c0_23] : memref<1xf32, #tpu.memory_space<smem>>
      %32 = vector.broadcast %31 : f32 to vector<1x1xf32>
      %33 = arith.addf %30, %32 : vector<1x1xf32>
      %34 = vector.shape_cast %33 : vector<1x1xf32> to vector<1x1x1xf32>
      %35 = vector.shape_cast %34 : vector<1x1x1xf32> to vector<1x1x1xf32>
      %36 = vector.broadcast %35 : vector<1x1x1xf32> to vector<1x1x128xf32>
      %c0_24 = arith.constant 0 : index
      %c0_25 = arith.constant 0 : index
      %c0_26 = arith.constant 0 : index
      %37 = vector.load %arg9[%c0_24, %c0_25, %c0_26] : memref<1x1x128xf32, #tpu.memory_space<vmem>>, vector<1x1x128xf32>
      tpu.vector_store %arg9[%c0_24, %c0_25, %c0_26], %36 {strides = array<i32>} : memref<1x1x128xf32, #tpu.memory_space<vmem>>, vector<1x1x128xf32>,
    } else {
    }
    return
  }
  func.func @transform_0(%arg0: i32, %arg1: i32) -> (i32, i32, i32) {
    %c0_i32 = arith.constant 0 : i32
    %c0_i32_0 = arith.constant 0 : i32
    return %arg0, %arg1, %c0_i32 : i32, i32, i32
  }
  func.func @transform_1(%arg0: i32, %arg1: i32) -> (i32, i32, i32) {
    %c0_i32 = arith.constant 0 : i32
    %c0_i32_0 = arith.constant 0 : i32
    return %arg0, %arg1, %c0_i32 : i32, i32, i32
  }
  func.func @transform_2(%arg0: i32, %arg1: i32) -> (i32, i32) {
    %c0_i32 = arith.constant 0 : i32
    %c0_i32_0 = arith.constant 0 : i32
    %c0_i32_1 = arith.constant 0 : i32
    return %c0_i32, %c0_i32_0 : i32, i32
  }
  func.func @transform_3(%arg0: i32, %arg1: i32) -> (i32, i32) {
    %c0_i32 = arith.constant 0 : i32
    %c0_i32_0 = arith.constant 0 : i32
    %c0_i32_1 = arith.constant 0 : i32
    return %c0_i32, %c0_i32_0 : i32, i32
  }
  func.func @transform_4(%arg0: i32, %arg1: i32) -> (i32, i32) {
    %c0_i32 = arith.constant 0 : i32
    %c0_i32_0 = arith.constant 0 : i32
    %c0_i32_1 = arith.constant 0 : i32
    return %c0_i32, %c0_i32_0 : i32, i32
  }
  func.func @transform_5(%arg0: i32, %arg1: i32) -> (i32, i32) {
    %c0_i32 = arith.constant 0 : i32
    %c0_i32_0 = arith.constant 0 : i32
    %c0_i32_1 = arith.constant 0 : i32
    return %c0_i32, %c0_i32_0 : i32, i32
  }
  func.func @transform_6(%arg0: i32, %arg1: i32) -> i32 {
    %c0_i32 = arith.constant 0 : i32
    %c0_i32_0 = arith.constant 0 : i32
    return %c0_i32 : i32
  }
  func.func @transform_7(%arg0: i32, %arg1: i32) -> (i32, i32, i32) {
    %c0_i32 = arith.constant 0 : i32
    %c0_i32_0 = arith.constant 0 : i32
    %c0_i32_1 = arith.constant 0 : i32
    return %arg0, %c0_i32, %c0_i32_0 : i32, i32, i32
  }
}

</mosaic_0001>

<llo_original>
// kernel: tpu_custom_call.1
$region0: #{tpu_custom_call.1}
  #allocation0 [shape = 'u32[]', space=smem, size = 0x4, offset = 0x4, fixed_abs, tag = 'smem constant byte address 0x4 - core index']
  #allocation1 [shape = 'u32[144,128]{1,0:T(1,128)}', space=vmem, size = 0x12000, scoped, tag = 'internal scratch']
  #allocation2 [shape = 'f32[1,32]{1,0:T(1,128)}', space=vmem, size = 0x200, scoped, tag = 'scratch operand']
  #allocation3 [shape = 'f32[1,32]{1,0:T(1,128)}', space=vmem, size = 0x200, scoped, tag = 'scratch operand']
  #allocation4 [shape = 'f32[1]{0:T(128)S(6)}', space=smem, size = 0x200, scoped, tag = 'scoped memory for tpu_custom_call.1']
  %s0 = inlined_call_operand.hbm [shape: f32[2,24,32], index: 0, kind: input, shape index: {}]
  %s1 = inlined_call_operand.hbm [shape: f32[2,16,32], index: 1, kind: input, shape index: {}]
  %s2 = inlined_call_operand.hbm [shape: f32[32,32], index: 2, kind: input, shape index: {}]
  %s3 = inlined_call_operand.hbm [shape: f32[32,32], index: 3, kind: input, shape index: {}]
  %s4 = inlined_call_operand.vmem [shape: f32[1,32], index: 4, kind: input, shape index: {}]
  %s5 = inlined_call_operand.vmem [shape: f32[1,32], index: 5, kind: input, shape index: {}]
  %s6 = inlined_call_operand.<no memory space> [shape: f32[1], index: 6, kind: input, shape index: {}]
  %s7 = inlined_call_operand.hbm [shape: f32[2,1,128], index: 7, kind: output, shape index: {}]
  %s8 = sld [smem:[#allocation0]]
  $region81: #{tpu_custom_call.1} parent=0
    _
  %s10 = ssub.s32 1, %s8
  %s11 = scalar_select 0, %s10, %s8
  %12 = sst [smem:[#allocation4]] %s6
  $region1: #{tpu_custom_call.1} parent=0
    #allocation5 [shape = 'u8[32768]{0}', space=vmem, size = 0x8000, scoped, tag = 'input window, operand 0']
    #allocation6 [shape = 's32[2]{0}', space=sflag, size = 0x8, scoped, tag = 'scoped memory for tpu_custom_call.1']
    #allocation7 [shape = 's32[2]{0}', space=sflag, size = 0x8, scoped, tag = 'scoped memory for tpu_custom_call.1']
    #allocation8 [shape = 'u8[32768]{0}', space=vmem, size = 0x8000, scoped, tag = 'input window, operand 1']
    #allocation9 [shape = 's32[2]{0}', space=sflag, size = 0x8, scoped, tag = 'scoped memory for tpu_custom_call.1']
    #allocation10 [shape = 'u8[16384]{0}', space=vmem, size = 0x4000, scoped, tag = 'input window, operand 2, single buffered']
    #allocation11 [shape = 'u8[16384]{0}', space=vmem, size = 0x4000, scoped, tag = 'input window, operand 3, single buffered']
    #allocation12 [shape = 's32[1]{0}', space=sflag, size = 0x4, scoped, tag = 'scoped memory for tpu_custom_call.1']
    #allocation13 [shape = 'u8[1024]{0}', space=vmem, size = 0x400, scoped, tag = 'output window, operand 0']
    %13 = vsyncpa [#allocation6], 0
    %s14 = scalar_lea.sflag [#allocation6], 1
    %15 = vsyncpa %s14, 0
    %16 = vsyncpa [#allocation9], 0
    %s17 = scalar_lea.sflag [#allocation9], 1
    %18 = vsyncpa %s17, 0
    %19 = vsyncpa [#allocation12], 0
    %20 = vsyncpa [#allocation7], 0
    %s21 = scalar_lea.sflag [#allocation7], 1
    %22 = vsyncpa %s21, 0
    loop: start=0, step=1, limit=4
    $region2: #{tpu_custom_call.1} parent=1 // loop_pre_header
      _
    $region3: #{tpu_custom_call.1} parent=1 // loop_header
      %s24 = sphi 0, %s28
      %p25 = scmp.ge.s32.totalorder %s24, 4
      %s31 = sphi 0, %s43
      %s32 = sphi 0, %s39
      %s33 = sphi 0, %s31
      %s34 = sphi 0, %s32
      %s35 = sphi 0, %s33
      %s36 = sphi 0, %s34
      %s48 = sphi 0, %s50
      %s51 = sphi 0, %s48
      %s52 = sphi 0, %s51
      %s68 = sphi 0, %s52
      %s76 = sphi 0, %s78
      %s79 = sphi 0, %s76
      %s80 = sphi 0, %s79
      %s96 = sphi 0, %s80
      %s100 = sphi 0, %s100
      %s102 = sphi 0, %s100
      %s103 = sphi 0, %s102
      %s117 = sphi 0, %s103
      %s121 = sphi 0, %s121
      %s123 = sphi 0, %s121
      %s124 = sphi 0, %s123
      %s138 = sphi 0, %s124
      %s142 = sphi 0, %s142
      %s144 = sphi 0, %s142
      %s145 = sphi 0, %s144
      %s159 = sphi 0, %s145
      %s163 = sphi 0, %s163
      %s165 = sphi 0, %s163
      %s166 = sphi 0, %s165
      %s180 = sphi 0, %s166
      %s184 = sphi 0, %s184
      %s186 = sphi 0, %s184
      %s187 = sphi 0, %s186
      %s201 = sphi 0, %s187
      %s207 = sphi 0, %s209
      %s210 = sphi 0, %s207
      %s211 = sphi 0, %s210
      %s227 = sphi 0, %s211
    $region4: #{tpu_custom_call.1} parent=1 // loop_header_branch
      %27 = sbr.rel (%p25) target = $region8
    $region5: #{tpu_custom_call.1} parent=1 // loop_body
      %s29 = ssub.s32 %s24, 1
      %s30 = ssub.s32 %s24, 2
      %s37 = sadd.s32 1, %s32
      %p38 = scmp.ge.s32.totalorder %s37, 1
      %s39 = scalar_select %p38, 0, %s37
      %s40 = sadd.s32 1, %s31
      %s41 = scalar_select %p38, %s40, %s31
      %p42 = scmp.ge.s32.totalorder %s41, 2
      %s43 = scalar_select %p42, 0, %s41
      %s44 = ssub.s32 %s31, %s43
      %s45 = ssub.s32 %s32, %s39
      %s46 = sor.u32 %s44, %s45
      %p47 = scmp.eq.s32.totalorder %s46, 0
      %s49 = sadd.s32 %s48, 1
      %s50 = scalar_select %p47, %s48, %s49
      %p53 = pneg %p47
      %p54 = scmp.eq.s32.totalorder %s24, 1
      %p55 = por %p53, %p54
      %p56 = scmp.ne.s32.totalorder %s48, %s51
      %p57 = scmp.eq.s32.totalorder %s24, 0
      %p58 = por %p56, %p57
      %p59 = scmp.ne.s32.totalorder %s48, %s51
      %p60 = scmp.eq.s32.totalorder %s29, 1
      %p61 = por %p59, %p60
      %p62 = scmp.ne.s32.totalorder %s51, %s52
      %p63 = scmp.eq.s32.totalorder %s29, 0
      %p64 = por %p62, %p63
      %p65 = scmp.ne.s32.totalorder %s51, %s52
      %p66 = scmp.eq.s32.totalorder %s30, 1
      %p67 = por %p65, %p66
      %p69 = scmp.ne.s32.totalorder %s52, %s68
      %p70 = scmp.eq.s32.totalorder %s30, 0
      %p71 = por %p69, %p70
      %s72 = ssub.s32 %s31, %s43
      %s73 = ssub.s32 %s32, %s39
      %s74 = sor.u32 %s72, %s73
      %p75 = scmp.eq.s32.totalorder %s74, 0
      %s77 = sadd.s32 %s76, 1
      %s78 = scalar_select %p75, %s76, %s77
      %p81 = pneg %p75
      %p82 = scmp.eq.s32.totalorder %s24, 1
      %p83 = por %p81, %p82
      %p84 = scmp.ne.s32.totalorder %s76, %s79
      %p85 = scmp.eq.s32.totalorder %s24, 0
      %p86 = por %p84, %p85
      %p87 = scmp.ne.s32.totalorder %s76, %s79
      %p88 = scmp.eq.s32.totalorder %s29, 1
      %p89 = por %p87, %p88
      %p90 = scmp.ne.s32.totalorder %s79, %s80
      %p91 = scmp.eq.s32.totalorder %s29, 0
      %p92 = por %p90, %p91
      %p93 = scmp.ne.s32.totalorder %s79, %s80
      %p94 = scmp.eq.s32.totalorder %s30, 1
      %p95 = por %p93, %p94
      %p97 = scmp.ne.s32.totalorder %s80, %s96
      %p98 = scmp.eq.s32.totalorder %s30, 0
      %p99 = por %p97, %p98
      %s101 = sadd.s32 %s100, 1
      %p104 = scmp.eq.s32.totalorder %s24, 1
      %p105 = scmp.ne.s32.totalorder %s100, %s102
      %p106 = scmp.eq.s32.totalorder %s24, 0
      %p107 = por %p105, %p106
      %p108 = scmp.ne.s32.totalorder %s100, %s102
      %p109 = scmp.eq.s32.totalorder %s29, 1
      %p110 = por %p108, %p109
      %p111 = scmp.ne.s32.totalorder %s102, %s103
      %p112 = scmp.eq.s32.totalorder %s29, 0
      %p113 = por %p111, %p112
      %p114 = scmp.ne.s32.totalorder %s102, %s103
      %p115 = scmp.eq.s32.totalorder %s30, 1
      %p116 = por %p114, %p115
      %p118 = scmp.ne.s32.totalorder %s103, %s117
      %p119 = scmp.eq.s32.totalorder %s30, 0
      %p120 = por %p118, %p119
      %s122 = sadd.s32 %s121, 1
      %p125 = scmp.eq.s32.totalorder %s24, 1
      %p126 = scmp.ne.s32.totalorder %s121, %s123
      %p127 = scmp.eq.s32.totalorder %s24, 0
      %p128 = por %p126, %p127
      %p129 = scmp.ne.s32.totalorder %s121, %s123
      %p130 = scmp.eq.s32.totalorder %s29, 1
      %p131 = por %p129, %p130
      %p132 = scmp.ne.s32.totalorder %s123, %s124
      %p133 = scmp.eq.s32.totalorder %s29, 0
      %p134 = por %p132, %p133
      %p135 = scmp.ne.s32.totalorder %s123, %s124
      %p136 = scmp.eq.s32.totalorder %s30, 1
      %p137 = por %p135, %p136
      %p139 = scmp.ne.s32.totalorder %s124, %s138
      %p140 = scmp.eq.s32.totalorder %s30, 0
      %p141 = por %p139, %p140
      %s143 = sadd.s32 %s142, 1
      %p146 = scmp.eq.s32.totalorder %s24, 1
      %p147 = scmp.ne.s32.totalorder %s142, %s144
      %p148 = scmp.eq.s32.totalorder %s24, 0
      %p149 = por %p147, %p148
      %p150 = scmp.ne.s32.totalorder %s142, %s144
      %p151 = scmp.eq.s32.totalorder %s29, 1
      %p152 = por %p150, %p151
      %p153 = scmp.ne.s32.totalorder %s144, %s145
      %p154 = scmp.eq.s32.totalorder %s29, 0
      %p155 = por %p153, %p154
      %p156 = scmp.ne.s32.totalorder %s144, %s145
      %p157 = scmp.eq.s32.totalorder %s30, 1
      %p158 = por %p156, %p157
      %p160 = scmp.ne.s32.totalorder %s145, %s159
      %p161 = scmp.eq.s32.totalorder %s30, 0
      %p162 = por %p160, %p161
      %s164 = sadd.s32 %s163, 1
      %p167 = scmp.eq.s32.totalorder %s24, 1
      %p168 = scmp.ne.s32.totalorder %s163, %s165
      %p169 = scmp.eq.s32.totalorder %s24, 0
      %p170 = por %p168, %p169
      %p171 = scmp.ne.s32.totalorder %s163, %s165
      %p172 = scmp.eq.s32.totalorder %s29, 1
      %p173 = por %p171, %p172
      %p174 = scmp.ne.s32.totalorder %s165, %s166
      %p175 = scmp.eq.s32.totalorder %s29, 0
      %p176 = por %p174, %p175
      %p177 = scmp.ne.s32.totalorder %s165, %s166
      %p178 = scmp.eq.s32.totalorder %s30, 1
      %p179 = por %p177, %p178
      %p181 = scmp.ne.s32.totalorder %s166, %s180
      %p182 = scmp.eq.s32.totalorder %s30, 0
      %p183 = por %p181, %p182
      %s185 = sadd.s32 %s184, 1
      %p188 = scmp.eq.s32.totalorder %s24, 1
      %p189 = scmp.ne.s32.totalorder %s184, %s186
      %p190 = scmp.eq.s32.totalorder %s24, 0
      %p191 = por %p189, %p190
      %p192 = scmp.ne.s32.totalorder %s184, %s186
      %p193 = scmp.eq.s32.totalorder %s29, 1
      %p194 = por %p192, %p193
      %p195 = scmp.ne.s32.totalorder %s186, %s187
      %p196 = scmp.eq.s32.totalorder %s29, 0
      %p197 = por %p195, %p196
      %p198 = scmp.ne.s32.totalorder %s186, %s187
      %p199 = scmp.eq.s32.totalorder %s30, 1
      %p200 = por %p198, %p199
      %p202 = scmp.ne.s32.totalorder %s187, %s201
      %p203 = scmp.eq.s32.totalorder %s30, 0
      %p204 = por %p202, %p203
      %s205 = ssub.s32 %s31, %s43
      %p206 = scmp.eq.s32.totalorder %s205, 0
      %s208 = sadd.s32 %s207, 1
      %s209 = scalar_select %p206, %s207, %s208
      %p212 = pneg %p206
      %p213 = scmp.eq.s32.totalorder %s24, 1
      %p214 = por %p212, %p213
      %p215 = scmp.ne.s32.totalorder %s207, %s210
      %p216 = scmp.eq.s32.totalorder %s24, 0
      %p217 = por %p215, %p216
      %p218 = scmp.ne.s32.totalorder %s207, %s210
      %p219 = scmp.eq.s32.totalorder %s29, 1
      %p220 = por %p218, %p219
      %p221 = scmp.ne.s32.totalorder %s210, %s211
      %p222 = scmp.eq.s32.totalorder %s29, 0
      %p223 = por %p221, %p222
      %p224 = scmp.ne.s32.totalorder %s210, %s211
      %p225 = scmp.eq.s32.totalorder %s30, 1
      %p226 = por %p224, %p225
      %p228 = scmp.ne.s32.totalorder %s211, %s227
      %p229 = scmp.eq.s32.totalorder %s30, 0
      %p230 = por %p228, %p229
      %p231 = scmp.le.s32.totalorder 1, %s24
      %p232 = scmp.lt.s32.totalorder %s24, 3
      %p233 = pnand %p231, %p232
      %p234 = pneg %p233
      // Predicated region
      $region9: #{tpu_custom_call.1} parent=5 // pred_check
        _
      $region10: #{tpu_custom_call.1} parent=5 // pred_check_branch
        %236 = sbr.rel (%p233) target = $region12
      $region11: #{tpu_custom_call.1} parent=5 // pred_region
        %s237 = ssub.s32 %s24, 1
        // Predicated region
        $region13: #{tpu_custom_call.1} parent=11 // pred_check
          %p238 = pneg %p113
        $region14: #{tpu_custom_call.1} parent=11 // pred_check_branch
          %240 = sbr.rel (%p238) target = $region16
        $region15: #{tpu_custom_call.1} parent=11 // pred_region
          %s242 = ssub.s32 512, 512
          %243 = vsyncadd [#allocation9], %s242
          %s244 = sshll.u32 [#allocation10], 4
          %s245 = int_to_ptr.vmem [resolvable:$true] %s244
          %250 = dma.hbm_to_vmem [thread:$0]  %s2, 512, %s245, [#allocation9], 128, 128, 8
        $region16: #{tpu_custom_call.1} parent=11 // pred_fallthru
          _
        // Predicated region
        $region17: #{tpu_custom_call.1} parent=11 // pred_check
          %p251 = pneg %p134
        $region18: #{tpu_custom_call.1} parent=11 // pred_check_branch
          %253 = sbr.rel (%p251) target = $region20
        $region19: #{tpu_custom_call.1} parent=11 // pred_region
          %s255 = ssub.s32 512, 512
          %256 = vsyncadd [#allocation12], %s255
          %s257 = sshll.u32 [#allocation11], 4
          %s258 = int_to_ptr.vmem [resolvable:$true] %s257
          %263 = dma.hbm_to_vmem [thread:$0]  %s3, 512, %s258, [#allocation12], 128, 128, 8
        $region20: #{tpu_custom_call.1} parent=11 // pred_fallthru
          _
        // Predicated region
        $region21: #{tpu_custom_call.1} parent=11 // pred_check
          %p264 = pneg %p155
        $region22: #{tpu_custom_call.1} parent=11 // pred_check_branch
          %266 = sbr.rel (%p264) target = $region24
        $region23: #{tpu_custom_call.1} parent=11 // pred_region
          _
        $region24: #{tpu_custom_call.1} parent=11 // pred_fallthru
          _
        // Predicated region
        $region25: #{tpu_custom_call.1} parent=11 // pred_check
          %p267 = pneg %p176
        $region26: #{tpu_custom_call.1} parent=11 // pred_check_branch
          %269 = sbr.rel (%p267) target = $region28
        $region27: #{tpu_custom_call.1} parent=11 // pred_region
          _
        $region28: #{tpu_custom_call.1} parent=11 // pred_fallthru
          _
        // Predicated region
        $region29: #{tpu_custom_call.1} parent=11 // pred_check
          %p270 = pneg %p197
        $region30: #{tpu_custom_call.1} parent=11 // pred_check_branch
          %272 = sbr.rel (%p270) target = $region32
        $region31: #{tpu_custom_call.1} parent=11 // pred_region
          _
        $region32: #{tpu_custom_call.1} parent=11 // pred_fallthru
          _
      $region12: #{tpu_custom_call.1} parent=5 // pred_fallthru
        _
      %p273 = scmp.lt.s32.totalorder %s24, 2
      // Predicated region
      $region33: #{tpu_custom_call.1} parent=5 // pred_check
        %p274 = pneg %p273
      $region34: #{tpu_custom_call.1} parent=5 // pred_check_branch
        %276 = sbr.rel (%p274) target = $region36
      $region35: #{tpu_custom_call.1} parent=5 // pred_region
        // Predicated region
        $region37: #{tpu_custom_call.1} parent=35 // pred_check
          %p277 = pneg %p58
        $region38: #{tpu_custom_call.1} parent=35 // pred_check_branch
          %279 = sbr.rel (%p277) target = $region40
        $region39: #{tpu_custom_call.1} parent=35 // pred_region
          %s280 = sand.u32 %s48, 1
          %s281 = scalar_lea.sflag [#allocation6], %s280
          %s282 = sand.u32 %s48, 1
          %s283 = smul.addr %s282, 32
          %s284 = scalar_lea.vmem [#allocation5], %s283
          %s285 = smul.u32 4, %s32
          %s286 = ssub.s32 3, %s285
          %s287 = smul.u32 128, %s286
          %s289 = ssub.s32 512, %s287
          %290 = vsyncadd %s281, %s289
          %p291 = scmp.ne.s32.totalorder 0, %s287
          %s292 = smul.addr %s31, 3
          %s293 = sadd.s32 %s285, %s292
          %s294 = smul.addr %s293, 128
          %s295 = scalar_lea.hbm %s0, %s294
          %s296 = smul.u32 8, %s286
          %s297 = sshll.u32 %s284, 4
          %s298 = int_to_ptr.vmem [resolvable:$true] %s297
          %s299 = sshll.u32 %s296, 4
          %303 = dma.hbm_to_vmem [thread:$0]  (%p291), %s295, %s299, %s298, %s281, 128, 128, 8
        $region40: #{tpu_custom_call.1} parent=35 // pred_fallthru
          _
        // Predicated region
        $region41: #{tpu_custom_call.1} parent=35 // pred_check
          %p304 = pneg %p86
        $region42: #{tpu_custom_call.1} parent=35 // pred_check_branch
          %306 = sbr.rel (%p304) target = $region44
        $region43: #{tpu_custom_call.1} parent=35 // pred_region
          %s307 = sand.u32 %s24, 1
          %s308 = scalar_lea.sflag [#allocation9], %s307
          %s309 = sand.u32 %s76, 1
          %s310 = smul.addr %s309, 32
          %s311 = scalar_lea.vmem [#allocation8], %s310
          %s312 = smul.u32 4, %s32
          %s313 = ssub.s32 2, %s312
          %s314 = smul.u32 128, %s313
          %s316 = ssub.s32 512, %s314
          %317 = vsyncadd %s308, %s316
          %p318 = scmp.ne.s32.totalorder 0, %s314
          %s319 = smul.addr %s31, 2
          %s320 = sadd.s32 %s312, %s319
          %s321 = smul.addr %s320, 128
          %s322 = scalar_lea.hbm %s1, %s321
          %s323 = smul.u32 8, %s313
          %s324 = sshll.u32 %s311, 4
          %s325 = int_to_ptr.vmem [resolvable:$true] %s324
          %s326 = sshll.u32 %s323, 4
          %330 = dma.hbm_to_vmem [thread:$0]  (%p318), %s322, %s326, %s325, %s308, 128, 128, 8
        $region44: #{tpu_custom_call.1} parent=35 // pred_fallthru
          _
      $region36: #{tpu_custom_call.1} parent=5 // pred_fallthru
        _
      %p331 = scmp.le.s32.totalorder 1, %s24
      %p332 = scmp.lt.s32.totalorder %s24, 3
      %p333 = pnand %p331, %p332
      %p334 = pneg %p333
      // Predicated region
      $region45: #{tpu_custom_call.1} parent=5 // pred_check
        _
      $region46: #{tpu_custom_call.1} parent=5 // pred_check_branch
        %336 = sbr.rel (%p333) target = $region48
      $region47: #{tpu_custom_call.1} parent=5 // pred_region
        %s337 = ssub.s32 %s24, 1
        %s338 = sand.u32 %s51, 1
        %s339 = scalar_lea.sflag [#allocation6], %s338
        %s340 = sand.u32 %s51, 1
        %s341 = smul.addr %s340, 32
        %s342 = scalar_lea.vmem [#allocation5], %s341
        // Predicated region
        $region49: #{tpu_custom_call.1} parent=47 // pred_check
          %p343 = pneg %p64
        $region50: #{tpu_custom_call.1} parent=47 // pred_check_branch
          %345 = sbr.rel (%p343) target = $region52
        $region51: #{tpu_custom_call.1} parent=47 // pred_region
          %346 = dma.done %s339, 512
        $region52: #{tpu_custom_call.1} parent=47 // pred_fallthru
          _
        %s347 = sand.u32 %s29, 1
        %s348 = scalar_lea.sflag [#allocation9], %s347
        %s349 = sand.u32 %s79, 1
        %s350 = smul.addr %s349, 32
        %s351 = scalar_lea.vmem [#allocation8], %s350
        // Predicated region
        $region53: #{tpu_custom_call.1} parent=47 // pred_check
          %p352 = pneg %p92
        $region54: #{tpu_custom_call.1} parent=47 // pred_check_branch
          %354 = sbr.rel (%p352) target = $region56
        $region55: #{tpu_custom_call.1} parent=47 // pred_region
          %355 = dma.done %s348, 512
        $region56: #{tpu_custom_call.1} parent=47 // pred_fallthru
          _
        // Predicated region
        $region57: #{tpu_custom_call.1} parent=47 // pred_check
          %p356 = pneg %p113
        $region58: #{tpu_custom_call.1} parent=47 // pred_check_branch
          %358 = sbr.rel (%p356) target = $region60
        $region59: #{tpu_custom_call.1} parent=47 // pred_region
          %359 = dma.done [#allocation9], 512
        $region60: #{tpu_custom_call.1} parent=47 // pred_fallthru
          _
        // Predicated region
        $region61: #{tpu_custom_call.1} parent=47 // pred_check
          %p360 = pneg %p134
        $region62: #{tpu_custom_call.1} parent=47 // pred_check_branch
          %362 = sbr.rel (%p360) target = $region64
        $region63: #{tpu_custom_call.1} parent=47 // pred_region
          %363 = dma.done [#allocation12], 512
        $region64: #{tpu_custom_call.1} parent=47 // pred_fallthru
          _
        %s364 = sand.u32 %s51, 1
        %s365 = scalar_lea.sflag [#allocation6], %s364
        %s366 = sand.u32 %s51, 1
        %s367 = smul.addr %s366, 32
        %s368 = scalar_lea.vmem [#allocation5], %s367
        %p369 = pneg %p64
        %p370 = pneg %p61
        %s371 = sand.u32 %s29, 1
        %s372 = scalar_lea.sflag [#allocation9], %s371
        %s373 = sand.u32 %s79, 1
        %s374 = smul.addr %s373, 32
        %s375 = scalar_lea.vmem [#allocation8], %s374
        %p376 = pneg %p92
        %p377 = pneg %p89
        %p378 = pneg %p113
        %p379 = pneg %p110
        %p380 = pneg %p134
        %p381 = pneg %p131
        %p382 = pneg %p155
        %p383 = pneg %p152
        %p384 = pneg %p176
        %p385 = pneg %p173
        %p386 = pneg %p197
        %p387 = pneg %p194
        %p388 = pneg %p223
        %p389 = pneg %p220
        %s390 = sand.u32 %s210, 1
        %s391 = scalar_lea.sflag [#allocation7], %s390
        %s392 = sand.u32 %s210, 1
        %s393 = scalar_lea.vmem [#allocation13], %s392
        %s394 = smul.u32 4, %s34
        %s395 = ssub.s32 3, %s394
        %s396 = smul.u32 128, %s395
        %s397 = smul.u32 4, %s34
        %s398 = ssub.s32 2, %s397
        %s399 = smul.u32 128, %s398
        %p400 = scmp.eq.s32.totalorder %s34, 0
        // Predicated region
        $region65: #{tpu_custom_call.1} parent=47 // pred_check
          %p401 = pneg %p400
        $region66: #{tpu_custom_call.1} parent=47 // pred_check_branch
          %403 = sbr.rel (%p401) target = $region68
        $region67: #{tpu_custom_call.1} parent=47 // pred_region
          %vm404 = vcmask 253952
          %405 = vst.msk [vmem:[#allocation2] sm:$0x1] %vm404, 0.0
          %406 = vst.msk [vmem:[#allocation3] sm:$0x1] %vm404, 0.0
          %v407 = vld [vmem:[#allocation2] sm:$0x1]
          %v408 = vld [vmem:[%s342] sm:$0xff]
          %v409 = vld [vmem:[%s342 + $0x8] sm:$0xff]
          %v410 = vld [vmem:[%s342 + $0x10] sm:$0xff]
          %vm411 = vcmask 261120
          %v412 = vsel %vm411, %v408, 0.0
          %v413 = vsel %vm411, %v409, 0.0
          %v414 = vadd.f32 %v412, %v413
          %v415 = vsel %vm411, %v410, 0.0
          %v416 = vadd.f32 %v414, %v415
          %v417 = vrot.slane %v416, 4
          %v418 = vadd.f32 %v416, %v417
          %v419 = vrot.slane %v418, 2
          %v420 = vadd.f32 %v418, %v419
          %v421 = vrot.slane %v420, 1
          %v422 = vadd.f32 %v420, %v421
          %v423 = vadd.f32 %v407, %v422
          %424 = vst.msk [vmem:[#allocation2] sm:$0x1] %vm404, %v423
          %v425 = vld [vmem:[#allocation3] sm:$0x1]
          %v426 = vld [vmem:[%s351] sm:$0xff]
          %v427 = vld [vmem:[%s351 + $0x8] sm:$0xff]
          %v428 = vsel %vm411, %v426, 0.0
          %v429 = vsel %vm411, %v427, 0.0
          %v430 = vadd.f32 %v428, %v429
          %v431 = vrot.slane %v430, 4
          %v432 = vadd.f32 %v430, %v431
          %v433 = vrot.slane %v432, 2
          %v434 = vadd.f32 %v432, %v433
          %v435 = vrot.slane %v434, 1
          %v436 = vadd.f32 %v434, %v435
          %v437 = vadd.f32 %v425, %v436
          %438 = vst.msk [vmem:[#allocation3] sm:$0x1] %vm404, %v437
          %v439 = vld [vmem:[#allocation2] sm:$0x1]
          %v440 = vmul.f32 %v439, 0.041666668
          %v441 = vld [vmem:[#allocation3] sm:$0x1]
          %v442 = vmul.f32 %v441, 0.0625
          %v443 = vld [vmem:[#allocation10] sm:$0xff]
          %v444 = vld [vmem:[#allocation10 + $0x8] sm:$0xff]
          %v445 = vld [vmem:[#allocation10 + $0x10] sm:$0xff]
          %v446 = vld [vmem:[#allocation10 + $0x18] sm:$0xff]
          %v447 = vld [vmem:[#allocation11] sm:$0xff]
          %v448 = vld [vmem:[#allocation11 + $0x8] sm:$0xff]
          %v449 = vld [vmem:[#allocation11 + $0x10] sm:$0xff]
          %v450 = vld [vmem:[#allocation11 + $0x18] sm:$0xff]
          %v452 = vsel %vm411, %v442, 0
          %454 = vmatprep.subr.mxu0 0.0
          %455 = vmatpush1.msra.mxu0 0.0
          %456 = vmatprep.subr.mxu0 0.0
          %457 = vmatpush1.msra.mxu0 0.0
          %458 = vmatprep.subr.mxu0 0.0
          %459 = vmatpush1.msra.mxu0 0.0
          %460 = vmatprep.subr.mxu0 0.0
          %461 = vmatpush1.msra.mxu0 0.0
          %462 = vmatprep.subr.mxu0 0.0
          %463 = vmatpush1.msra.mxu0 0.0
          %464 = vmatprep.subr.mxu0 0.0
          %465 = vmatpush1.msra.mxu0 0.0
          %466 = vmatprep.subr.mxu0 0.0
          %467 = vmatpush1.msra.mxu0 0.0
          %468 = vmatprep.subr.mxu0 0.0
          %469 = vmatpush1.msra.mxu0 0.0
          %470 = vmatprep.subr.mxu0 0.0
          %471 = vmatpush1.msra.mxu0 0.0
          %472 = vmatprep.subr.mxu0 0.0
          %473 = vmatpush1.msra.mxu0 0.0
          %474 = vmatprep.subr.mxu0 0.0
          %475 = vmatpush1.msra.mxu0 0.0
          %476 = vmatprep.subr.mxu0 0.0
          %477 = vmatpush1.msra.mxu0 0.0
          %478 = vmatprep.subr.mxu0 0.0
          %479 = vmatpush1.msra.mxu0 %v450
          %480 = vmatprep.subr.mxu0 0.0
          %481 = vmatpush1.msra.mxu0 %v449
          %482 = vmatprep.subr.mxu0 0.0
          %483 = vmatpush1.msra.mxu0 %v448
          %484 = vmatprep.subr.mxu0 0.0
          %485 = vmatpush1.msra.mxu0 %v447
          %486 = vmatprep.subr.mxu0 0.0
          %487 = vmatpush2.msra.mxu0 0.0
          %488 = vmatprep.subr.mxu0 0.0
          %489 = vmatpush2.msra.mxu0 0.0
          %490 = vmatprep.subr.mxu0 0.0
          %491 = vmatpush2.msra.mxu0 0.0
          %492 = vmatprep.subr.mxu0 0.0
          %493 = vmatpush2.msra.mxu0 0.0
          %494 = vmatprep.subr.mxu0 0.0
          %495 = vmatpush2.msra.mxu0 0.0
          %496 = vmatprep.subr.mxu0 0.0
          %497 = vmatpush2.msra.mxu0 0.0
          %498 = vmatprep.subr.mxu0 0.0
          %499 = vmatpush2.msra.mxu0 0.0
          %500 = vmatprep.subr.mxu0 0.0
          %501 = vmatpush2.msra.mxu0 0.0
          %502 = vmatprep.subr.mxu0 0.0
          %503 = vmatpush2.msra.mxu0 0.0
          %504 = vmatprep.subr.mxu0 0.0
          %505 = vmatpush2.msra.mxu0 0.0
          %506 = vmatprep.subr.mxu0 0.0
          %507 = vmatpush2.msra.mxu0 0.0
          %508 = vmatprep.subr.mxu0 0.0
          %509 = vmatpush2.msra.mxu0 0.0
          %510 = vmatprep.subr.mxu0 0.0
          %511 = vmatpush2.msra.mxu0 0.0
          %512 = vmatprep.subr.mxu0 0.0
          %513 = vmatpush2.msra.mxu0 0.0
          %514 = vmatprep.subr.mxu0 0.0
          %515 = vmatpush2.msra.mxu0 0.0
          %516 = vmatprep.subr.mxu0 0.0
          %517 = vmatpush2.msra.mxu0 0.0
          %518 = vmatprep.mubr.f32.mxu0 0.0
          %519 = vmatmul.mubr.f32.gmra.mxu0 %v452
          %v520 = vpop.f32.mrf.mxu0
          %v521 = vadd.f32 0.0, %v520
          %v522 = vpop.f32.mrf.mxu0
          %523 = vdwg.mxu0
          %v525 = vsel %vm411, %v440, 0
          %527 = vmatprep.subr.mxu0 0.0
          %528 = vmatpush1.msra.mxu0 0.0
          %529 = vmatprep.subr.mxu0 0.0
          %530 = vmatpush1.msra.mxu0 0.0
          %531 = vmatprep.subr.mxu0 0.0
          %532 = vmatpush1.msra.mxu0 0.0
          %533 = vmatprep.subr.mxu0 0.0
          %534 = vmatpush1.msra.mxu0 0.0
          %535 = vmatprep.subr.mxu0 0.0
          %536 = vmatpush1.msra.mxu0 0.0
          %537 = vmatprep.subr.mxu0 0.0
          %538 = vmatpush1.msra.mxu0 0.0
          %539 = vmatprep.subr.mxu0 0.0
          %540 = vmatpush1.msra.mxu0 0.0
          %541 = vmatprep.subr.mxu0 0.0
          %542 = vmatpush1.msra.mxu0 0.0
          %543 = vmatprep.subr.mxu0 0.0
          %544 = vmatpush1.msra.mxu0 0.0
          %545 = vmatprep.subr.mxu0 0.0
          %546 = vmatpush1.msra.mxu0 0.0
          %547 = vmatprep.subr.mxu0 0.0
          %548 = vmatpush1.msra.mxu0 0.0
          %549 = vmatprep.subr.mxu0 0.0
          %550 = vmatpush1.msra.mxu0 0.0
          %551 = vmatprep.subr.mxu0 0.0
          %552 = vmatpush1.msra.mxu0 %v446
          %553 = vmatprep.subr.mxu0 0.0
          %554 = vmatpush1.msra.mxu0 %v445
          %555 = vmatprep.subr.mxu0 0.0
          %556 = vmatpush1.msra.mxu0 %v444
          %557 = vmatprep.subr.mxu0 0.0
          %558 = vmatpush1.msra.mxu0 %v443
          %559 = vmatprep.subr.mxu0 0.0
          %560 = vmatpush2.msra.mxu0 0.0
          %561 = vmatprep.subr.mxu0 0.0
          %562 = vmatpush2.msra.mxu0 0.0
          %563 = vmatprep.subr.mxu0 0.0
          %564 = vmatpush2.msra.mxu0 0.0
          %565 = vmatprep.subr.mxu0 0.0
          %566 = vmatpush2.msra.mxu0 0.0
          %567 = vmatprep.subr.mxu0 0.0
          %568 = vmatpush2.msra.mxu0 0.0
          %569 = vmatprep.subr.mxu0 0.0
          %570 = vmatpush2.msra.mxu0 0.0
          %571 = vmatprep.subr.mxu0 0.0
          %572 = vmatpush2.msra.mxu0 0.0
          %573 = vmatprep.subr.mxu0 0.0
          %574 = vmatpush2.msra.mxu0 0.0
          %575 = vmatprep.subr.mxu0 0.0
          %576 = vmatpush2.msra.mxu0 0.0
          %577 = vmatprep.subr.mxu0 0.0
          %578 = vmatpush2.msra.mxu0 0.0
          %579 = vmatprep.subr.mxu0 0.0
          %580 = vmatpush2.msra.mxu0 0.0
          %581 = vmatprep.subr.mxu0 0.0
          %582 = vmatpush2.msra.mxu0 0.0
          %583 = vmatprep.subr.mxu0 0.0
          %584 = vmatpush2.msra.mxu0 0.0
          %585 = vmatprep.subr.mxu0 0.0
          %586 = vmatpush2.msra.mxu0 0.0
          %587 = vmatprep.subr.mxu0 0.0
          %588 = vmatpush2.msra.mxu0 0.0
          %589 = vmatprep.subr.mxu0 0.0
          %590 = vmatpush2.msra.mxu0 0.0
          %591 = vmatprep.mubr.f32.mxu0 0.0
          %592 = vmatmul.mubr.f32.gmra.mxu0 %v525
          %v593 = vpop.f32.mrf.mxu0
          %v594 = vadd.f32 %v521, %v593
          %v595 = vpop.f32.mrf.mxu0
          %596 = vdwg.mxu0
          %v597 = vld [vmem:[%s4] sm:$0x1]
          %v598 = vadd.f32 %v594, %v597
          %v599 = vmax.f32 %v598, 0.0
          %v600 = vld [vmem:[%s5] sm:$0x1]
          %v601 = vmul.f32 %v599, %v600
          %v602 = vsel %vm404, %v601, 0.0
          %603 = vadd.xlane.f32.xlu0 %v602
          %v604 = vpop.xlane.xlu0 %603
          %s605 = sld [smem:[#allocation4]]
          %v606 = vstv %s605
          %v607 = vadd.f32 %v604, %v606
          %608 = vst [vmem:[%s393] sm:$0x1] %v607
        $region68: #{tpu_custom_call.1} parent=47 // pred_fallthru
          _
        %s609 = sand.u32 %s210, 1
        %s610 = scalar_lea.sflag [#allocation7], %s609
        %s611 = sand.u32 %s210, 1
        %s612 = scalar_lea.vmem [#allocation13], %s611
        // Predicated region
        $region69: #{tpu_custom_call.1} parent=47 // pred_check
          %p613 = pneg %p220
        $region70: #{tpu_custom_call.1} parent=47 // pred_check_branch
          %615 = sbr.rel (%p613) target = $region72
        $region71: #{tpu_custom_call.1} parent=47 // pred_region
          %s617 = ssub.s32 16, 16
          %618 = vsyncadd %s610, %s617
          %s619 = smul.addr %s33, 16
          %s620 = scalar_lea.hbm %s7, %s619
          %s622 = sshll.u32 %s612, 4
          %s623 = int_to_ptr.vmem [resolvable:$true] %s622
          %625 = dma.vmem_to_hbm [thread:$0]  %s623, 16, %s620, %s610
        $region72: #{tpu_custom_call.1} parent=47 // pred_fallthru
          _
      $region48: #{tpu_custom_call.1} parent=5 // pred_fallthru
        _
      %p626 = scmp.le.s32.totalorder 2, %s24
      // Predicated region
      $region73: #{tpu_custom_call.1} parent=5 // pred_check
        %p627 = pneg %p626
      $region74: #{tpu_custom_call.1} parent=5 // pred_check_branch
        %629 = sbr.rel (%p627) target = $region76
      $region75: #{tpu_custom_call.1} parent=5 // pred_region
        %s630 = ssub.s32 %s24, 2
        // Predicated region
        $region77: #{tpu_custom_call.1} parent=75 // pred_check
          %p631 = pneg %p226
        $region78: #{tpu_custom_call.1} parent=75 // pred_check_branch
          %633 = sbr.rel (%p631) target = $region80
        $region79: #{tpu_custom_call.1} parent=75 // pred_region
          %s634 = sand.u32 %s211, 1
          %s635 = scalar_lea.sflag [#allocation7], %s634
          %s636 = sand.u32 %s211, 1
          %s637 = scalar_lea.vmem [#allocation13], %s636
          %638 = dma.done %s635, 16
        $region80: #{tpu_custom_call.1} parent=75 // pred_fallthru
          _
      $region76: #{tpu_custom_call.1} parent=5 // pred_fallthru
        _
    $region6: #{tpu_custom_call.1} parent=1 // loop_footer
      %s28 = sadd.s32 1, %s24
    $region7: #{tpu_custom_call.1} parent=1 // loop_footer_branch
      %23 = sbr.rel target = $region3
    $region8: #{tpu_custom_call.1} parent=1 // loop_exit
      _
    %639 = vsyncpa [#allocation6], 1
    %s640 = scalar_lea.sflag [#allocation6], 1
    %641 = vsyncpa %s640, 1
    %642 = vsyncpa [#allocation9], 1
    %s643 = scalar_lea.sflag [#allocation9], 1
    %644 = vsyncpa %s643, 1
    %645 = vsyncpa [#allocation12], 1
    %646 = vsyncpa [#allocation7], 1
    %s647 = scalar_lea.sflag [#allocation7], 1
    %648 = vsyncpa %s647, 1

</llo_original>
